<compile_context>
chip_gen: v7x
topology: tpu7x:2x2x1
jax: 0.10.0
libtpu: 0.0.40
codegen_flags: <defaults>
</compile_context>

<pallas_src>
import math

import jax
import jax.numpy as jnp
from jax import lax
from jax.experimental import pallas as pl
from jax.experimental.pallas import tpu as pltpu


def _round_up(x, m):
    return ((x + m - 1) // m) * m


def _acoustic_mlp_kernel(x_ref,
                         w0_ref, b0_ref,
                         w1_ref, b1_ref,
                         w2_ref, b2_ref,
                         wm_ref, bm_ref,
                         out_ref):
    """Fused 4-layer MLP.

    x_ref : (batch_tile, in_size)        activations as given (batch-major)
    w*_ref: (out_features, in_features)  weights, f32
    b*_ref: (out_features, 1)            biases, f32 (lane-broadcast)
    out   : (out_size, batch_tile)       f32, batch on lanes (lane-dense store)

    Ragged last tile: any padded batch rows of the x block may hold stale
    VMEM, but every output column depends only on its own input column and
    Pallas masks the out-of-range writeback, so garbage columns never escape.
    (This invariant would break if a cross-column reduction were added.)
    """

    def sigmoid(y):
        # Single EUP push per vreg (tanh) instead of exp + divide (two).
        return 0.5 * jnp.tanh(0.5 * y) + 0.5

    x = x_ref[...]                                    # (bt, in)

    # First layer: W0 @ x^T expressed directly as a dot_general contracting
    # the in_features axes — no transpose of x is ever materialized.
    h0 = sigmoid(
        lax.dot_general(w0_ref[...], x, (((1,), (1,)), ((), ())),
                        preferred_element_type=jnp.float32) + b0_ref[...])
    # Remaining layers: activations already (features, batch) -> plain W @ h.
    h1 = sigmoid(
        jnp.dot(w1_ref[...], h0, preferred_element_type=jnp.float32)
        + b1_ref[...])
    h2 = sigmoid(
        jnp.dot(w2_ref[...], h1, preferred_element_type=jnp.float32)
        + b2_ref[...])
    mean = (jnp.dot(wm_ref[...], h2, preferred_element_type=jnp.float32)
            + bm_ref[...])

    out_ref[...] = mean.astype(out_ref.dtype)         # (out, bt), lane-dense


def acoustic_model_v3_forward(x, params, *, batch_tile=None,
                              feature_major_output=False):
    """Forward pass.

    x: (B, input_size) f32.
    Returns (B, output_size) f32 by default (PyTorch layout); with
    feature_major_output=True returns (output_size, B) and skips the final
    transpose (lets the consumer fuse it / avoids an extra HBM round trip).
    """
    B, in_size = x.shape
    hidden = params["w0"].shape[0]
    out_size = params["wm"].shape[0]

    # --- batch tiling --------------------------------------------------------
    # Small/medium B: one block -> zero per-step overhead (best on 1-TC
    # v5e/v6e, fine on v7x at these sizes).  Large B: >=4 even steps of
    # <=2048 columns so v7x's two TensorCores each get >=2 pipelined steps.
    if batch_tile is None:
        if B <= 2048:
            batch_tile = B
        else:
            batch_tile = min(2048, _round_up(pl.cdiv(B, 4), 128))
    if batch_tile != B:
        assert batch_tile % 128 == 0, "batch_tile must be a multiple of 128"
    grid = (pl.cdiv(B, batch_tile),)    # ragged tail masked by Pallas

    w0, b0 = params["w0"], params["b0"]
    w1, b1 = params["w1"], params["b1"]
    w2, b2 = params["w2"], params["b2"]
    wm, bm = params["wm"], params["bm"]

    # Weights/biases: full-array blocks, invariant across grid steps
    # (index_map always (0, 0)) -> held in VMEM, never re-DMA'd per step.
    def full_spec(shape):
        return pl.BlockSpec(shape, lambda i: (0, 0))

    grid_spec = pltpu.PrefetchScalarGridSpec(
        num_scalar_prefetch=0,
        grid=grid,
        in_specs=[
            pl.BlockSpec((batch_tile, in_size), lambda i: (i, 0)),    # x
            full_spec((hidden, in_size)),  full_spec((hidden, 1)),    # layer 0
            full_spec((hidden, hidden)),   full_spec((hidden, 1)),    # layer 1
            full_spec((hidden, hidden)),   full_spec((hidden, 1)),    # layer 2
            full_spec((out_size, hidden)), full_spec((out_size, 1)),  # mean
        ],
        out_specs=pl.BlockSpec((out_size, batch_tile), lambda i: (0, i)),
    )

    # Advisory cost hint (kernel-only traffic; no wrapper transposes left on
    # the input side).  tanh-sigmoid = 1 transcendental per element.
    w_elems = in_size * hidden + 2 * hidden * hidden + hidden * out_size
    b_elems = 3 * hidden + out_size
    cost = pl.CostEstimate(
        flops=2 * B * (in_size * hidden + 2 * hidden * hidden
                       + hidden * out_size),
        transcendentals=3 * B * hidden,
        bytes_accessed=4 * B * (in_size + out_size)
        + 4 * w_elems + 4 * b_elems,
    )

    out_t = pl.pallas_call(
        _acoustic_mlp_kernel,
        out_shape=jax.ShapeDtypeStruct((out_size, B), jnp.float32),
        grid_spec=grid_spec,
        compiler_params=pltpu.CompilerParams(
            dimension_semantics=("parallel",)),
        cost_estimate=cost,
    )(x, w0, b0, w1, b1, w2, b2, wm, bm)

    if feature_major_output:
        return out_t                    # (out_size, B), no extra HBM round trip
    return out_t.T                      # PyTorch layout (B, out_size)


def init_params(key, input_size, hidden_size, output_size):
    """PyTorch-style nn.Linear init; weights kept in (out_features, in_features)."""
    def linear(k, fan_in, fan_out):
        kw, kb = jax.random.split(k)
        bound = 1.0 / math.sqrt(fan_in)
        w = jax.random.uniform(kw, (fan_out, fan_in), jnp.float32, -bound, bound)
        b = jax.random.uniform(kb, (fan_out, 1), jnp.float32, -bound, bound)
        return w, b

    k0, k1, k2, k3 = jax.random.split(key, 4)
    w0, b0 = linear(k0, input_size, hidden_size)
    w1, b1 = linear(k1, hidden_size, hidden_size)
    w2, b2 = linear(k2, hidden_size, hidden_size)
    wm, bm = linear(k3, hidden_size, output_size)
    # variance buffer is registered but unused in forward(); keep for parity.
    variance = jnp.ones((output_size,), jnp.float32)
    return dict(w0=w0, b0=b0, w1=w1, b1=b1, w2=w2, b2=b2, wm=wm, bm=bm,
                variance=variance)


def _reference_forward(x, p):
    """Pure-JAX f32 reference in PyTorch orientation (x @ W.T + b)."""
    def layer(a, w, b):
        return jnp.dot(a, w.T, preferred_element_type=jnp.float32) + b.T
    h0 = jax.nn.sigmoid(layer(x,  p["w0"], p["b0"]))
    h1 = jax.nn.sigmoid(layer(h0, p["w1"], p["b1"]))
    h2 = jax.nn.sigmoid(layer(h1, p["w2"], p["b2"]))
    return layer(h2, p["wm"], p["bm"])


if __name__ == "__main__":
    key = jax.random.PRNGKey(0)
    kx, kp = jax.random.split(key)

    # Small model dims matching the module spec.
    batch, input_size, hidden_size, output_size = 512, 16, 32, 8
    x = jax.random.normal(kx, (batch, input_size), jnp.float32)
    params = init_params(kp, input_size, hidden_size, output_size)

    fwd = jax.jit(acoustic_model_v3_forward)
    out = jax.block_until_ready(fwd(x, params))
    assert out.shape == (batch, output_size)

    ref = _reference_forward(x, params)
    assert jnp.allclose(out, ref, atol=2e-3, rtol=2e-3), "mismatch vs f32 ref"

    # Feature-major path (skips the final transpose) must agree too.
    out_fm = jax.block_until_ready(
        jax.jit(lambda a, p: acoustic_model_v3_forward(
            a, p, feature_major_output=True))(x, params))
    assert out_fm.shape == (output_size, batch)
    assert jnp.allclose(out_fm.T, ref, atol=2e-3, rtol=2e-3)

    print("KERNEL_OK")
</pallas_src>

<mosaic_0001>
module attributes {stable_mosaic.version = 11 : i64} {
  func.func @_acoustic_mlp_kernel(%arg0: i32, %arg1: memref<512x16xf32, #tpu.memory_space<vmem>>, %arg2: memref<32x16xf32, #tpu.memory_space<vmem>>, %arg3: memref<32x1xf32, #tpu.memory_space<vmem>>, %arg4: memref<32x32xf32, #tpu.memory_space<vmem>>, %arg5: memref<32x1xf32, #tpu.memory_space<vmem>>, %arg6: memref<32x32xf32, #tpu.memory_space<vmem>>, %arg7: memref<32x1xf32, #tpu.memory_space<vmem>>, %arg8: memref<8x32xf32, #tpu.memory_space<vmem>>, %arg9: memref<8x1xf32, #tpu.memory_space<vmem>>, %arg10: memref<8x512xf32, #tpu.memory_space<vmem>>) attributes {dimension_semantics = [#tpu.dimension_semantics<parallel>], iteration_bounds = array<i64: 1>, scalar_prefetch = 0 : i64, scratch_operands = 0 : i64, tpu.core_type = #tpu.core_type<tc>, window_params = [{transform_indices = @transform_0, window_bounds = array<i64: 512, 16>}, {pipeline_mode = #tpu.pipeline_mode<synchronous>, transform_indices = @transform_1, window_bounds = array<i64: 32, 16>}, {pipeline_mode = #tpu.pipeline_mode<synchronous>, transform_indices = @transform_2, window_bounds = array<i64: 32, 1>}, {pipeline_mode = #tpu.pipeline_mode<synchronous>, transform_indices = @transform_3, window_bounds = array<i64: 32, 32>}, {pipeline_mode = #tpu.pipeline_mode<synchronous>, transform_indices = @transform_4, window_bounds = array<i64: 32, 1>}, {pipeline_mode = #tpu.pipeline_mode<synchronous>, transform_indices = @transform_5, window_bounds = array<i64: 32, 32>}, {pipeline_mode = #tpu.pipeline_mode<synchronous>, transform_indices = @transform_6, window_bounds = array<i64: 32, 1>}, {pipeline_mode = #tpu.pipeline_mode<synchronous>, transform_indices = @transform_7, window_bounds = array<i64: 8, 32>}, {pipeline_mode = #tpu.pipeline_mode<synchronous>, transform_indices = @transform_8, window_bounds = array<i64: 8, 1>}, {transform_indices = @transform_9, window_bounds = array<i64: 8, 512>}]} {
    %c0 = arith.constant 0 : index
    %c0_0 = arith.constant 0 : index
    %0 = vector.load %arg1[%c0, %c0_0] : memref<512x16xf32, #tpu.memory_space<vmem>>, vector<512x16xf32>
    %c0_1 = arith.constant 0 : index
    %c0_2 = arith.constant 0 : index
    %1 = vector.load %arg2[%c0_1, %c0_2] : memref<32x16xf32, #tpu.memory_space<vmem>>, vector<32x16xf32>
    %cst = arith.constant dense<0.000000e+00> : vector<32x512xf32>
    %2 = tpu.matmul %1, %0, %cst {dimension_numbers = #tpu.dot_dimension_numbers<[1], [1], [0], [0], [0, 0, 1, 0], [], []>} : vector<32x16xf32>, vector<512x16xf32>, vector<32x512xf32> -> vector<32x512xf32>
    %c0_3 = arith.constant 0 : index
    %c0_4 = arith.constant 0 : index
    %3 = vector.load %arg3[%c0_3, %c0_4] : memref<32x1xf32, #tpu.memory_space<vmem>>, vector<32x1xf32>
    %4 = vector.broadcast %3 : vector<32x1xf32> to vector<32x512xf32>
    %5 = arith.addf %2, %4 : vector<32x512xf32>
    %cst_5 = arith.constant 5.000000e-01 : f32
    %6 = vector.broadcast %cst_5 : f32 to vector<32x512xf32>
    %7 = arith.mulf %6, %5 : vector<32x512xf32>
    %8 = math.tanh %7 : vector<32x512xf32>
    %cst_6 = arith.constant 5.000000e-01 : f32
    %9 = vector.broadcast %cst_6 : f32 to vector<32x512xf32>
    %10 = arith.mulf %9, %8 : vector<32x512xf32>
    %cst_7 = arith.constant 5.000000e-01 : f32
    %11 = vector.broadcast %cst_7 : f32 to vector<32x512xf32>
    %12 = arith.addf %10, %11 : vector<32x512xf32>
    %c0_8 = arith.constant 0 : index
    %c0_9 = arith.constant 0 : index
    %13 = vector.load %arg4[%c0_8, %c0_9] : memref<32x32xf32, #tpu.memory_space<vmem>>, vector<32x32xf32>
    %cst_10 = arith.constant dense<0.000000e+00> : vector<32x512xf32>
    %14 = tpu.matmul %13, %12, %cst_10 {dimension_numbers = #tpu.dot_dimension_numbers<[1], [0], [0], [1], [0, 0, 1, 1], [], []>} : vector<32x32xf32>, vector<32x512xf32>, vector<32x512xf32> -> vector<32x512xf32>
    %c0_11 = arith.constant 0 : index
    %c0_12 = arith.constant 0 : index
    %15 = vector.load %arg5[%c0_11, %c0_12] : memref<32x1xf32, #tpu.memory_space<vmem>>, vector<32x1xf32>
    %16 = vector.broadcast %15 : vector<32x1xf32> to vector<32x512xf32>
    %17 = arith.addf %14, %16 : vector<32x512xf32>
    %cst_13 = arith.constant 5.000000e-01 : f32
    %18 = vector.broadcast %cst_13 : f32 to vector<32x512xf32>
    %19 = arith.mulf %18, %17 : vector<32x512xf32>
    %20 = math.tanh %19 : vector<32x512xf32>
    %cst_14 = arith.constant 5.000000e-01 : f32
    %21 = vector.broadcast %cst_14 : f32 to vector<32x512xf32>
    %22 = arith.mulf %21, %20 : vector<32x512xf32>
    %cst_15 = arith.constant 5.000000e-01 : f32
    %23 = vector.broadcast %cst_15 : f32 to vector<32x512xf32>
    %24 = arith.addf %22, %23 : vector<32x512xf32>
    %c0_16 = arith.constant 0 : index
    %c0_17 = arith.constant 0 : index
    %25 = vector.load %arg6[%c0_16, %c0_17] : memref<32x32xf32, #tpu.memory_space<vmem>>, vector<32x32xf32>
    %cst_18 = arith.constant dense<0.000000e+00> : vector<32x512xf32>
    %26 = tpu.matmul %25, %24, %cst_18 {dimension_numbers = #tpu.dot_dimension_numbers<[1], [0], [0], [1], [0, 0, 1, 1], [], []>} : vector<32x32xf32>, vector<32x512xf32>, vector<32x512xf32> -> vector<32x512xf32>
    %c0_19 = arith.constant 0 : index
    %c0_20 = arith.constant 0 : index
    %27 = vector.load %arg7[%c0_19, %c0_20] : memref<32x1xf32, #tpu.memory_space<vmem>>, vector<32x1xf32>
    %28 = vector.broadcast %27 : vector<32x1xf32> to vector<32x512xf32>
    %29 = arith.addf %26, %28 : vector<32x512xf32>
    %cst_21 = arith.constant 5.000000e-01 : f32
    %30 = vector.broadcast %cst_21 : f32 to vector<32x512xf32>
    %31 = arith.mulf %30, %29 : vector<32x512xf32>
    %32 = math.tanh %31 : vector<32x512xf32>
    %cst_22 = arith.constant 5.000000e-01 : f32
    %33 = vector.broadcast %cst_22 : f32 to vector<32x512xf32>
    %34 = arith.mulf %33, %32 : vector<32x512xf32>
    %cst_23 = arith.constant 5.000000e-01 : f32
    %35 = vector.broadcast %cst_23 : f32 to vector<32x512xf32>
    %36 = arith.addf %34, %35 : vector<32x512xf32>
    %c0_24 = arith.constant 0 : index
    %c0_25 = arith.constant 0 : index
    %37 = vector.load %arg8[%c0_24, %c0_25] : memref<8x32xf32, #tpu.memory_space<vmem>>, vector<8x32xf32>
    %cst_26 = arith.constant dense<0.000000e+00> : vector<8x512xf32>
    %38 = tpu.matmul %37, %36, %cst_26 {dimension_numbers = #tpu.dot_dimension_numbers<[1], [0], [0], [1], [0, 0, 1, 1], [], []>} : vector<8x32xf32>, vector<32x512xf32>, vector<8x512xf32> -> vector<8x512xf32>
    %c0_27 = arith.constant 0 : index
    %c0_28 = arith.constant 0 : index
    %39 = vector.load %arg9[%c0_27, %c0_28] : memref<8x1xf32, #tpu.memory_space<vmem>>, vector<8x1xf32>
    %40 = vector.broadcast %39 : vector<8x1xf32> to vector<8x512xf32>
    %41 = arith.addf %38, %40 : vector<8x512xf32>
    %c0_29 = arith.constant 0 : index
    %c0_30 = arith.constant 0 : index
    %42 = vector.load %arg10[%c0_29, %c0_30] : memref<8x512xf32, #tpu.memory_space<vmem>>, vector<8x512xf32>
    tpu.vector_store %arg10[%c0_29, %c0_30], %41 {strides = array<i32>} : memref<8x512xf32, #tpu.memory_space<vmem>>, vector<8x512xf32>,
    return
  }
  func.func @transform_0(%arg0: i32) -> (i32, i32) {
    %c0_i32 = arith.constant 0 : i32
    %c0_i32_0 = arith.constant 0 : i32
    return %arg0, %c0_i32 : i32, i32
  }
  func.func @transform_1(%arg0: i32) -> (i32, i32) {
    %c0_i32 = arith.constant 0 : i32
    %c0_i32_0 = arith.constant 0 : i32
    %c0_i32_1 = arith.constant 0 : i32
    return %c0_i32, %c0_i32_0 : i32, i32
  }
  func.func @transform_2(%arg0: i32) -> (i32, i32) {
    %c0_i32 = arith.constant 0 : i32
    %c0_i32_0 = arith.constant 0 : i32
    %c0_i32_1 = arith.constant 0 : i32
    return %c0_i32, %c0_i32_0 : i32, i32
  }
  func.func @transform_3(%arg0: i32) -> (i32, i32) {
    %c0_i32 = arith.constant 0 : i32
    %c0_i32_0 = arith.constant 0 : i32
    %c0_i32_1 = arith.constant 0 : i32
    return %c0_i32, %c0_i32_0 : i32, i32
  }
  func.func @transform_4(%arg0: i32) -> (i32, i32) {
    %c0_i32 = arith.constant 0 : i32
    %c0_i32_0 = arith.constant 0 : i32
    %c0_i32_1 = arith.constant 0 : i32
    return %c0_i32, %c0_i32_0 : i32, i32
  }
  func.func @transform_5(%arg0: i32) -> (i32, i32) {
    %c0_i32 = arith.constant 0 : i32
    %c0_i32_0 = arith.constant 0 : i32
    %c0_i32_1 = arith.constant 0 : i32
    return %c0_i32, %c0_i32_0 : i32, i32
  }
  func.func @transform_6(%arg0: i32) -> (i32, i32) {
    %c0_i32 = arith.constant 0 : i32
    %c0_i32_0 = arith.constant 0 : i32
    %c0_i32_1 = arith.constant 0 : i32
    return %c0_i32, %c0_i32_0 : i32, i32
  }
  func.func @transform_7(%arg0: i32) -> (i32, i32) {
    %c0_i32 = arith.constant 0 : i32
    %c0_i32_0 = arith.constant 0 : i32
    %c0_i32_1 = arith.constant 0 : i32
    return %c0_i32, %c0_i32_0 : i32, i32
  }
  func.func @transform_8(%arg0: i32) -> (i32, i32) {
    %c0_i32 = arith.constant 0 : i32
    %c0_i32_0 = arith.constant 0 : i32
    %c0_i32_1 = arith.constant 0 : i32
    return %c0_i32, %c0_i32_0 : i32, i32
  }
  func.func @transform_9(%arg0: i32) -> (i32, i32) {
    %c0_i32 = arith.constant 0 : i32
    %c0_i32_0 = arith.constant 0 : i32
    return %c0_i32, %arg0 : i32, i32
  }
}

</mosaic_0001>

<llo_original>
// kernel: acoustic_model_v3_forward.1
$region0: #{acoustic_model_v3_forward.1}
  #allocation0 [shape = 'u32[]', space=smem, size = 0x4, offset = 0x4, fixed_abs, tag = 'smem constant byte address 0x4 - core index']
  #allocation1 [shape = 'u32[144,128]{1,0:T(1,128)}', space=vmem, size = 0x12000, scoped, tag = 'internal scratch']
  %s0 = inlined_call_operand.vmem [shape: f32[512,16], index: 0, kind: input, shape index: {}]
  %s1 = inlined_call_operand.vmem [shape: f32[32,16], index: 1, kind: input, shape index: {}]
  %s2 = inlined_call_operand.vmem [shape: f32[32,1], index: 2, kind: input, shape index: {}]
  %s3 = inlined_call_operand.vmem [shape: f32[32,32], index: 3, kind: input, shape index: {}]
  %s4 = inlined_call_operand.vmem [shape: f32[32,1], index: 4, kind: input, shape index: {}]
  %s5 = inlined_call_operand.vmem [shape: f32[32,32], index: 5, kind: input, shape index: {}]
  %s6 = inlined_call_operand.vmem [shape: f32[32,1], index: 6, kind: input, shape index: {}]
  %s7 = inlined_call_operand.vmem [shape: f32[8,32], index: 7, kind: input, shape index: {}]
  %s8 = inlined_call_operand.vmem [shape: f32[8,1], index: 8, kind: input, shape index: {}]
  %s9 = inlined_call_operand.hbm [shape: f32[8,512], index: 9, kind: output, shape index: {}]
  %s10 = sld [smem:[#allocation0]]
  $region46: #{acoustic_model_v3_forward.1} parent=0
    _
  %s12 = ssub.s32 1, %s10
  %s13 = scalar_select 0, %s12, %s10
  $region1: #{acoustic_model_v3_forward.1} parent=0
    #allocation2 [shape = 'u8[16384]{0}', space=vmem, size = 0x4000, scoped, tag = 'output window, operand 0, single buffered']
    #allocation3 [shape = 's32[1]{0}', space=sflag, size = 0x4, scoped, tag = 'scoped memory for acoustic_model_v3_forward.1']
    %14 = vsyncpa [#allocation3], 0
    // Predicated region
    $region2: #{acoustic_model_v3_forward.1} parent=1 // pred_check
      _
    $region3: #{acoustic_model_v3_forward.1} parent=1 // pred_check_branch
      %16 = sbr.rel (0) target = $region5
    $region4: #{acoustic_model_v3_forward.1} parent=1 // pred_region
      _
    $region5: #{acoustic_model_v3_forward.1} parent=1 // pred_fallthru
      _
    // Predicated region
    $region6: #{acoustic_model_v3_forward.1} parent=1 // pred_check
      _
    $region7: #{acoustic_model_v3_forward.1} parent=1 // pred_check_branch
      %18 = sbr.rel (0) target = $region9
    $region8: #{acoustic_model_v3_forward.1} parent=1 // pred_region
      _
    $region9: #{acoustic_model_v3_forward.1} parent=1 // pred_fallthru
      _
    // Predicated region
    $region10: #{acoustic_model_v3_forward.1} parent=1 // pred_check
      _
    $region11: #{acoustic_model_v3_forward.1} parent=1 // pred_check_branch
      %20 = sbr.rel (0) target = $region13
    $region12: #{acoustic_model_v3_forward.1} parent=1 // pred_region
      _
    $region13: #{acoustic_model_v3_forward.1} parent=1 // pred_fallthru
      _
    // Predicated region
    $region14: #{acoustic_model_v3_forward.1} parent=1 // pred_check
      _
    $region15: #{acoustic_model_v3_forward.1} parent=1 // pred_check_branch
      %22 = sbr.rel (0) target = $region17
    $region16: #{acoustic_model_v3_forward.1} parent=1 // pred_region
      _
    $region17: #{acoustic_model_v3_forward.1} parent=1 // pred_fallthru
      _
    // Predicated region
    $region18: #{acoustic_model_v3_forward.1} parent=1 // pred_check
      _
    $region19: #{acoustic_model_v3_forward.1} parent=1 // pred_check_branch
      %24 = sbr.rel (0) target = $region21
    $region20: #{acoustic_model_v3_forward.1} parent=1 // pred_region
      _
    $region21: #{acoustic_model_v3_forward.1} parent=1 // pred_fallthru
      _
    // Predicated region
    $region22: #{acoustic_model_v3_forward.1} parent=1 // pred_check
      _
    $region23: #{acoustic_model_v3_forward.1} parent=1 // pred_check_branch
      %26 = sbr.rel (0) target = $region25
    $region24: #{acoustic_model_v3_forward.1} parent=1 // pred_region
      _
    $region25: #{acoustic_model_v3_forward.1} parent=1 // pred_fallthru
      _
    // Predicated region
    $region26: #{acoustic_model_v3_forward.1} parent=1 // pred_check
      _
    $region27: #{acoustic_model_v3_forward.1} parent=1 // pred_check_branch
      %28 = sbr.rel (0) target = $region29
    $region28: #{acoustic_model_v3_forward.1} parent=1 // pred_region
      _
    $region29: #{acoustic_model_v3_forward.1} parent=1 // pred_fallthru
      _
    // Predicated region
    $region30: #{acoustic_model_v3_forward.1} parent=1 // pred_check
      _
    $region31: #{acoustic_model_v3_forward.1} parent=1 // pred_check_branch
      %30 = sbr.rel (0) target = $region33
    $region32: #{acoustic_model_v3_forward.1} parent=1 // pred_region
      _
    $region33: #{acoustic_model_v3_forward.1} parent=1 // pred_fallthru
      _
    // Predicated region
    $region34: #{acoustic_model_v3_forward.1} parent=1 // pred_check
      _
    $region35: #{acoustic_model_v3_forward.1} parent=1 // pred_check_branch
      %32 = sbr.rel (0) target = $region37
    $region36: #{acoustic_model_v3_forward.1} parent=1 // pred_region
      _
    $region37: #{acoustic_model_v3_forward.1} parent=1 // pred_fallthru
      _
    %v33 = vld [vmem:[%s0] sm:$0xff]
    %v34 = vld [vmem:[%s0 + $0x8] sm:$0xff]
    %v35 = vld [vmem:[%s0 + $0x10] sm:$0xff]
    %v36 = vld [vmem:[%s0 + $0x18] sm:$0xff]
    %v37 = vld [vmem:[%s0 + $0x20] sm:$0xff]
    %v38 = vld [vmem:[%s0 + $0x28] sm:$0xff]
    %v39 = vld [vmem:[%s0 + $0x30] sm:$0xff]
    %v40 = vld [vmem:[%s0 + $0x38] sm:$0xff]
    %v41 = vld [vmem:[%s0 + $0x40] sm:$0xff]
    %v42 = vld [vmem:[%s0 + $0x48] sm:$0xff]
    %v43 = vld [vmem:[%s0 + $0x50] sm:$0xff]
    %v44 = vld [vmem:[%s0 + $0x58] sm:$0xff]
    %v45 = vld [vmem:[%s0 + $0x60] sm:$0xff]
    %v46 = vld [vmem:[%s0 + $0x68] sm:$0xff]
    %v47 = vld [vmem:[%s0 + $0x70] sm:$0xff]
    %v48 = vld [vmem:[%s0 + $0x78] sm:$0xff]
    %v49 = vld [vmem:[%s0 + $0x80] sm:$0xff]
    %v50 = vld [vmem:[%s0 + $0x88] sm:$0xff]
    %v51 = vld [vmem:[%s0 + $0x90] sm:$0xff]
    %v52 = vld [vmem:[%s0 + $0x98] sm:$0xff]
    %v53 = vld [vmem:[%s0 + $0xa0] sm:$0xff]
    %v54 = vld [vmem:[%s0 + $0xa8] sm:$0xff]
    %v55 = vld [vmem:[%s0 + $0xb0] sm:$0xff]
    %v56 = vld [vmem:[%s0 + $0xb8] sm:$0xff]
    %v57 = vld [vmem:[%s0 + $0xc0] sm:$0xff]
    %v58 = vld [vmem:[%s0 + $0xc8] sm:$0xff]
    %v59 = vld [vmem:[%s0 + $0xd0] sm:$0xff]
    %v60 = vld [vmem:[%s0 + $0xd8] sm:$0xff]
    %v61 = vld [vmem:[%s0 + $0xe0] sm:$0xff]
    %v62 = vld [vmem:[%s0 + $0xe8] sm:$0xff]
    %v63 = vld [vmem:[%s0 + $0xf0] sm:$0xff]
    %v64 = vld [vmem:[%s0 + $0xf8] sm:$0xff]
    %v65 = vld [vmem:[%s0 + $0x100] sm:$0xff]
    %v66 = vld [vmem:[%s0 + $0x108] sm:$0xff]
    %v67 = vld [vmem:[%s0 + $0x110] sm:$0xff]
    %v68 = vld [vmem:[%s0 + $0x118] sm:$0xff]
    %v69 = vld [vmem:[%s0 + $0x120] sm:$0xff]
    %v70 = vld [vmem:[%s0 + $0x128] sm:$0xff]
    %v71 = vld [vmem:[%s0 + $0x130] sm:$0xff]
    %v72 = vld [vmem:[%s0 + $0x138] sm:$0xff]
    %v73 = vld [vmem:[%s0 + $0x140] sm:$0xff]
    %v74 = vld [vmem:[%s0 + $0x148] sm:$0xff]
    %v75 = vld [vmem:[%s0 + $0x150] sm:$0xff]
    %v76 = vld [vmem:[%s0 + $0x158] sm:$0xff]
    %v77 = vld [vmem:[%s0 + $0x160] sm:$0xff]
    %v78 = vld [vmem:[%s0 + $0x168] sm:$0xff]
    %v79 = vld [vmem:[%s0 + $0x170] sm:$0xff]
    %v80 = vld [vmem:[%s0 + $0x178] sm:$0xff]
    %v81 = vld [vmem:[%s0 + $0x180] sm:$0xff]
    %v82 = vld [vmem:[%s0 + $0x188] sm:$0xff]
    %v83 = vld [vmem:[%s0 + $0x190] sm:$0xff]
    %v84 = vld [vmem:[%s0 + $0x198] sm:$0xff]
    %v85 = vld [vmem:[%s0 + $0x1a0] sm:$0xff]
    %v86 = vld [vmem:[%s0 + $0x1a8] sm:$0xff]
    %v87 = vld [vmem:[%s0 + $0x1b0] sm:$0xff]
    %v88 = vld [vmem:[%s0 + $0x1b8] sm:$0xff]
    %v89 = vld [vmem:[%s0 + $0x1c0] sm:$0xff]
    %v90 = vld [vmem:[%s0 + $0x1c8] sm:$0xff]
    %v91 = vld [vmem:[%s0 + $0x1d0] sm:$0xff]
    %v92 = vld [vmem:[%s0 + $0x1d8] sm:$0xff]
    %v93 = vld [vmem:[%s0 + $0x1e0] sm:$0xff]
    %v94 = vld [vmem:[%s0 + $0x1e8] sm:$0xff]
    %v95 = vld [vmem:[%s0 + $0x1f0] sm:$0xff]
    %v96 = vld [vmem:[%s0 + $0x1f8] sm:$0xff]
    %v97 = vld [vmem:[%s1] sm:$0xff]
    %v98 = vld [vmem:[%s1 + $0x8] sm:$0xff]
    %v99 = vld [vmem:[%s1 + $0x10] sm:$0xff]
    %v100 = vld [vmem:[%s1 + $0x18] sm:$0xff]
    %v101 = vld [vmem:[%s2] sm:$0xff]
    %v102 = vld [vmem:[%s2 + $0x8] sm:$0xff]
    %v103 = vld [vmem:[%s2 + $0x10] sm:$0xff]
    %v104 = vld [vmem:[%s2 + $0x18] sm:$0xff]
    %106 = vset.pattern.permute.xlu0 0
    %107 = vperm.xlu0 %106, %v101
    %v108 = vpop.permute.xlu0 %107
    %111 = vset.pattern.permute.xlu0 0
    %112 = vperm.xlu0 %111, %v102
    %v113 = vpop.permute.xlu0 %112
    %116 = vset.pattern.permute.xlu0 0
    %117 = vperm.xlu0 %116, %v103
    %v118 = vpop.permute.xlu0 %117
    %121 = vset.pattern.permute.xlu0 0
    %122 = vperm.xlu0 %121, %v104
    %v123 = vpop.permute.xlu0 %122
    %vm125 = vcmask 130048
    %v127 = vsel %vm125, %v97, 0
    %v130 = vsel %vm125, %v98, 0
    %v133 = vsel %vm125, %v99, 0
    %v136 = vsel %vm125, %v100, 0
    %v139 = vsel %vm125, %v33, 0
    %v142 = vsel %vm125, %v34, 0
    %v145 = vsel %vm125, %v35, 0
    %v148 = vsel %vm125, %v36, 0
    %v151 = vsel %vm125, %v37, 0
    %v154 = vsel %vm125, %v38, 0
    %v157 = vsel %vm125, %v39, 0
    %v160 = vsel %vm125, %v40, 0
    %v163 = vsel %vm125, %v41, 0
    %v166 = vsel %vm125, %v42, 0
    %v169 = vsel %vm125, %v43, 0
    %v172 = vsel %vm125, %v44, 0
    %v175 = vsel %vm125, %v45, 0
    %v178 = vsel %vm125, %v46, 0
    %v181 = vsel %vm125, %v47, 0
    %v184 = vsel %vm125, %v48, 0
    %v187 = vsel %vm125, %v49, 0
    %v190 = vsel %vm125, %v50, 0
    %v193 = vsel %vm125, %v51, 0
    %v196 = vsel %vm125, %v52, 0
    %v199 = vsel %vm125, %v53, 0
    %v202 = vsel %vm125, %v54, 0
    %v205 = vsel %vm125, %v55, 0
    %v208 = vsel %vm125, %v56, 0
    %v211 = vsel %vm125, %v57, 0
    %v214 = vsel %vm125, %v58, 0
    %v217 = vsel %vm125, %v59, 0
    %v220 = vsel %vm125, %v60, 0
    %v223 = vsel %vm125, %v61, 0
    %v226 = vsel %vm125, %v62, 0
    %v229 = vsel %vm125, %v63, 0
    %v232 = vsel %vm125, %v64, 0
    %v235 = vsel %vm125, %v65, 0
    %v238 = vsel %vm125, %v66, 0
    %v241 = vsel %vm125, %v67, 0
    %v244 = vsel %vm125, %v68, 0
    %v247 = vsel %vm125, %v69, 0
    %v250 = vsel %vm125, %v70, 0
    %v253 = vsel %vm125, %v71, 0
    %v256 = vsel %vm125, %v72, 0
    %v259 = vsel %vm125, %v73, 0
    %v262 = vsel %vm125, %v74, 0
    %v265 = vsel %vm125, %v75, 0
    %v268 = vsel %vm125, %v76, 0
    %v271 = vsel %vm125, %v77, 0
    %v274 = vsel %vm125, %v78, 0
    %v277 = vsel %vm125, %v79, 0
    %v280 = vsel %vm125, %v80, 0
    %v283 = vsel %vm125, %v81, 0
    %v286 = vsel %vm125, %v82, 0
    %v289 = vsel %vm125, %v83, 0
    %v292 = vsel %vm125, %v84, 0
    %v295 = vsel %vm125, %v85, 0
    %v298 = vsel %vm125, %v86, 0
    %v301 = vsel %vm125, %v87, 0
    %v304 = vsel %vm125, %v88, 0
    %v307 = vsel %vm125, %v89, 0
    %v310 = vsel %vm125, %v90, 0
    %v313 = vsel %vm125, %v91, 0
    %v316 = vsel %vm125, %v92, 0
    %v319 = vsel %vm125, %v93, 0
    %v322 = vsel %vm125, %v94, 0
    %v325 = vsel %vm125, %v95, 0
    %v328 = vsel %vm125, %v96, 0
    %330 = vmatprep.subr.mxu0 0.0
    %331 = vmatpush1.xpose.msra.mxu0 %v139
    %332 = vmatprep.subr.mxu0 0.0
    %333 = vmatpush1.xpose.msra.mxu0 %v142
    %334 = vmatprep.subr.mxu0 0.0
    %335 = vmatpush1.xpose.msra.mxu0 %v145
    %336 = vmatprep.subr.mxu0 0.0
    %337 = vmatpush1.xpose.msra.mxu0 %v148
    %338 = vmatprep.subr.mxu0 0.0
    %339 = vmatpush1.xpose.msra.mxu0 %v151
    %340 = vmatprep.subr.mxu0 0.0
    %341 = vmatpush1.xpose.msra.mxu0 %v154
    %342 = vmatprep.subr.mxu0 0.0
    %343 = vmatpush1.xpose.msra.mxu0 %v157
    %344 = vmatprep.subr.mxu0 0.0
    %345 = vmatpush1.xpose.msra.mxu0 %v160
    %346 = vmatprep.subr.mxu0 0.0
    %347 = vmatpush1.xpose.msra.mxu0 %v163
    %348 = vmatprep.subr.mxu0 0.0
    %349 = vmatpush1.xpose.msra.mxu0 %v166
    %350 = vmatprep.subr.mxu0 0.0
    %351 = vmatpush1.xpose.msra.mxu0 %v169
    %352 = vmatprep.subr.mxu0 0.0
    %353 = vmatpush1.xpose.msra.mxu0 %v172
    %354 = vmatprep.subr.mxu0 0.0
    %355 = vmatpush1.xpose.msra.mxu0 %v175
    %356 = vmatprep.subr.mxu0 0.0
    %357 = vmatpush1.xpose.msra.mxu0 %v178
    %358 = vmatprep.subr.mxu0 0.0
    %359 = vmatpush1.xpose.msra.mxu0 %v181
    %360 = vmatprep.subr.mxu0 0.0
    %361 = vmatpush1.xpose.msra.mxu0 %v184
    %362 = vmatprep.subr.mxu0 0.0
    %363 = vmatpush1.xpose.msra.mxu0 %v187
    %364 = vmatprep.subr.mxu0 0.0
    %365 = vmatpush1.xpose.msra.mxu0 %v190
    %366 = vmatprep.subr.mxu0 0.0
    %367 = vmatpush1.xpose.msra.mxu0 %v193
    %368 = vmatprep.subr.mxu0 0.0
    %369 = vmatpush1.xpose.msra.mxu0 %v196
    %370 = vmatprep.subr.mxu0 0.0
    %371 = vmatpush1.xpose.msra.mxu0 %v199
    %372 = vmatprep.subr.mxu0 0.0
    %373 = vmatpush1.xpose.msra.mxu0 %v202
    %374 = vmatprep.subr.mxu0 0.0
    %375 = vmatpush1.xpose.msra.mxu0 %v205
    %376 = vmatprep.subr.mxu0 0.0
    %377 = vmatpush1.xpose.msra.mxu0 %v208
    %378 = vmatprep.subr.mxu0 0.0
    %379 = vmatpush1.xpose.msra.mxu0 %v211
    %380 = vmatprep.subr.mxu0 0.0
    %381 = vmatpush1.xpose.msra.mxu0 %v214
    %382 = vmatprep.subr.mxu0 0.0
    %383 = vmatpush1.xpose.msra.mxu0 %v217
    %384 = vmatprep.subr.mxu0 0.0
    %385 = vmatpush1.xpose.msra.mxu0 %v220
    %386 = vmatprep.subr.mxu0 0.0
    %387 = vmatpush1.xpose.msra.mxu0 %v223
    %388 = vmatprep.subr.mxu0 0.0
    %389 = vmatpush1.xpose.msra.mxu0 %v226
    %390 = vmatprep.subr.mxu0 0.0
    %391 = vmatpush1.xpose.msra.mxu0 %v229
    %392 = vmatprep.subr.mxu0 0.0
    %393 = vmatpush1.xpose.msra.mxu0 %v232
    %394 = vmatprep.mubr.f32.mxu0 0.0
    %395 = vmatmul.mubr.f32.gmra.mrb[0].mxu0 %v127
    %v396 = vpop.f32.mrb[0].mxu0
    %v397 = vadd.f32 %v108, %v396
    %v398 = vpop.f32.mrb[0].mxu0
    %v399 = vadd.f32 %v108, %v398
    %400 = vmatprep.mubr.f32.mxu0 0.0
    %401 = vmatmul.mubr.f32.gmra.mrb[0].mxu0 %v130
    %v402 = vpop.f32.mrb[0].mxu0
    %v403 = vadd.f32 %v113, %v402
    %v404 = vpop.f32.mrb[0].mxu0
    %v405 = vadd.f32 %v113, %v404
    %406 = vmatprep.mubr.f32.mxu0 0.0
    %407 = vmatmul.mubr.f32.gmra.mrb[0].mxu0 %v133
    %v408 = vpop.f32.mrb[0].mxu0
    %v409 = vadd.f32 %v118, %v408
    %v410 = vpop.f32.mrb[0].mxu0
    %v411 = vadd.f32 %v118, %v410
    %412 = vmatprep.mubr.f32.mxu0 0.0
    %413 = vmatmul.mubr.f32.gmra.mrb[0].mxu0 %v136
    %v414 = vpop.f32.mrb[0].mxu0
    %v415 = vadd.f32 %v123, %v414
    %v416 = vpop.f32.mrb[0].mxu0
    %v417 = vadd.f32 %v123, %v416
    %418 = vdwg.mxu0
    %419 = vmatprep.subr.mxu0 0.0
    %420 = vmatpush1.xpose.msra.mxu0 %v235
    %421 = vmatprep.subr.mxu0 0.0
    %422 = vmatpush1.xpose.msra.mxu0 %v238
    %423 = vmatprep.subr.mxu0 0.0
    %424 = vmatpush1.xpose.msra.mxu0 %v241
    %425 = vmatprep.subr.mxu0 0.0
    %426 = vmatpush1.xpose.msra.mxu0 %v244
    %427 = vmatprep.subr.mxu0 0.0
    %428 = vmatpush1.xpose.msra.mxu0 %v247
    %429 = vmatprep.subr.mxu0 0.0
    %430 = vmatpush1.xpose.msra.mxu0 %v250
    %431 = vmatprep.subr.mxu0 0.0
    %432 = vmatpush1.xpose.msra.mxu0 %v253
    %433 = vmatprep.subr.mxu0 0.0
    %434 = vmatpush1.xpose.msra.mxu0 %v256
    %435 = vmatprep.subr.mxu0 0.0
    %436 = vmatpush1.xpose.msra.mxu0 %v259
    %437 = vmatprep.subr.mxu0 0.0
    %438 = vmatpush1.xpose.msra.mxu0 %v262
    %439 = vmatprep.subr.mxu0 0.0
    %440 = vmatpush1.xpose.msra.mxu0 %v265
    %441 = vmatprep.subr.mxu0 0.0
    %442 = vmatpush1.xpose.msra.mxu0 %v268
    %443 = vmatprep.subr.mxu0 0.0
    %444 = vmatpush1.xpose.msra.mxu0 %v271
    %445 = vmatprep.subr.mxu0 0.0
    %446 = vmatpush1.xpose.msra.mxu0 %v274
    %447 = vmatprep.subr.mxu0 0.0
    %448 = vmatpush1.xpose.msra.mxu0 %v277
    %449 = vmatprep.subr.mxu0 0.0
    %450 = vmatpush1.xpose.msra.mxu0 %v280
    %451 = vmatprep.subr.mxu0 0.0
    %452 = vmatpush1.xpose.msra.mxu0 %v283
    %453 = vmatprep.subr.mxu0 0.0
    %454 = vmatpush1.xpose.msra.mxu0 %v286
    %455 = vmatprep.subr.mxu0 0.0
    %456 = vmatpush1.xpose.msra.mxu0 %v289
    %457 = vmatprep.subr.mxu0 0.0
    %458 = vmatpush1.xpose.msra.mxu0 %v292
    %459 = vmatprep.subr.mxu0 0.0
    %460 = vmatpush1.xpose.msra.mxu0 %v295
    %461 = vmatprep.subr.mxu0 0.0
    %462 = vmatpush1.xpose.msra.mxu0 %v298
    %463 = vmatprep.subr.mxu0 0.0
    %464 = vmatpush1.xpose.msra.mxu0 %v301
    %465 = vmatprep.subr.mxu0 0.0
    %466 = vmatpush1.xpose.msra.mxu0 %v304
    %467 = vmatprep.subr.mxu0 0.0
    %468 = vmatpush1.xpose.msra.mxu0 %v307
    %469 = vmatprep.subr.mxu0 0.0
    %470 = vmatpush1.xpose.msra.mxu0 %v310
    %471 = vmatprep.subr.mxu0 0.0
    %472 = vmatpush1.xpose.msra.mxu0 %v313
    %473 = vmatprep.subr.mxu0 0.0
    %474 = vmatpush1.xpose.msra.mxu0 %v316
    %475 = vmatprep.subr.mxu0 0.0
    %476 = vmatpush1.xpose.msra.mxu0 %v319
    %477 = vmatprep.subr.mxu0 0.0
    %478 = vmatpush1.xpose.msra.mxu0 %v322
    %479 = vmatprep.subr.mxu0 0.0
    %480 = vmatpush1.xpose.msra.mxu0 %v325
    %481 = vmatprep.subr.mxu0 0.0
    %482 = vmatpush1.xpose.msra.mxu0 %v328
    %483 = vmatprep.mubr.f32.mxu0 0.0
    %484 = vmatmul.mubr.f32.gmra.mrb[0].mxu0 %v127
    %v485 = vpop.f32.mrb[0].mxu0
    %v486 = vadd.f32 %v108, %v485
    %v487 = vpop.f32.mrb[0].mxu0
    %v488 = vadd.f32 %v108, %v487
    %489 = vmatprep.mubr.f32.mxu0 0.0
    %490 = vmatmul.mubr.f32.gmra.mrb[0].mxu0 %v130
    %v491 = vpop.f32.mrb[0].mxu0
    %v492 = vadd.f32 %v113, %v491
    %v493 = vpop.f32.mrb[0].mxu0
    %v494 = vadd.f32 %v113, %v493
    %495 = vmatprep.mubr.f32.mxu0 0.0
    %496 = vmatmul.mubr.f32.gmra.mrb[0].mxu0 %v133
    %v497 = vpop.f32.mrb[0].mxu0
    %v498 = vadd.f32 %v118, %v497
    %v499 = vpop.f32.mrb[0].mxu0
    %v500 = vadd.f32 %v118, %v499
    %501 = vmatprep.mubr.f32.mxu0 0.0
    %502 = vmatmul.mubr.f32.gmra.mrb[0].mxu0 %v136
    %v503 = vpop.f32.mrb[0].mxu0
    %v504 = vadd.f32 %v123, %v503
    %v505 = vpop.f32.mrb[0].mxu0
    %v506 = vadd.f32 %v123, %v505
    %507 = vdwg.mxu0
    %v508 = vmul.f32 %v397, 0.5
    %v509 = vmul.f32 %v399, 0.5
    %v510 = vmul.f32 %v486, 0.5
    %v511 = vmul.f32 %v488, 0.5
    %v512 = vmul.f32 %v403, 0.5
    %v513 = vmul.f32 %v405, 0.5
    %v514 = vmul.f32 %v492, 0.5
    %v515 = vmul.f32 %v494, 0.5
    %v516 = vmul.f32 %v409, 0.5
    %v517 = vmul.f32 %v411, 0.5
    %v518 = vmul.f32 %v498, 0.5
    %v519 = vmul.f32 %v500, 0.5
    %v520 = vmul.f32 %v415, 0.5
    %v521 = vmul.f32 %v417, 0.5
    %v522 = vmul.f32 %v504, 0.5
    %v523 = vmul.f32 %v506, 0.5
    %v524 = vtanh.pop %v508
    %v525 = vtanh.pop %v509
    %v526 = vtanh.pop %v510
    %v527 = vtanh.pop %v511
    %v528 = vtanh.pop %v512
    %v529 = vtanh.pop %v513
    %v530 = vtanh.pop %v514
    %v531 = vtanh.pop %v515
    %v532 = vtanh.pop %v516
    %v533 = vtanh.pop %v517
    %v534 = vtanh.pop %v518
    %v535 = vtanh.pop %v519
    %v536 = vtanh.pop %v520
    %v537 = vtanh.pop %v521
    %v538 = vtanh.pop %v522
    %v539 = vtanh.pop %v523
    %v540 = vmul.f32 %v524, 0.5
    %v541 = vmul.f32 %v525, 0.5
    %v542 = vmul.f32 %v526, 0.5
    %v543 = vmul.f32 %v527, 0.5
    %v544 = vmul.f32 %v528, 0.5
    %v545 = vmul.f32 %v529, 0.5
    %v546 = vmul.f32 %v530, 0.5
    %v547 = vmul.f32 %v531, 0.5
    %v548 = vmul.f32 %v532, 0.5
    %v549 = vmul.f32 %v533, 0.5
    %v550 = vmul.f32 %v534, 0.5
    %v551 = vmul.f32 %v535, 0.5
    %v552 = vmul.f32 %v536, 0.5
    %v553 = vmul.f32 %v537, 0.5
    %v554 = vmul.f32 %v538, 0.5
    %v555 = vmul.f32 %v539, 0.5
    %v556 = vadd.f32 %v540, 0.5
    %v557 = vadd.f32 %v541, 0.5
    %v558 = vadd.f32 %v542, 0.5
    %v559 = vadd.f32 %v543, 0.5
    %v560 = vadd.f32 %v544, 0.5
    %v561 = vadd.f32 %v545, 0.5
    %v562 = vadd.f32 %v546, 0.5
    %v563 = vadd.f32 %v547, 0.5
    %v564 = vadd.f32 %v548, 0.5
    %v565 = vadd.f32 %v549, 0.5
    %v566 = vadd.f32 %v550, 0.5
    %v567 = vadd.f32 %v551, 0.5
    %v568 = vadd.f32 %v552, 0.5
    %v569 = vadd.f32 %v553, 0.5
    %v570 = vadd.f32 %v554, 0.5
    %v571 = vadd.f32 %v555, 0.5
    %v572 = vld [vmem:[%s3] sm:$0xff]
    %v573 = vld [vmem:[%s3 + $0x8] sm:$0xff]
    %v574 = vld [vmem:[%s3 + $0x10] sm:$0xff]
    %v575 = vld [vmem:[%s3 + $0x18] sm:$0xff]
    %v576 = vld [vmem:[%s4] sm:$0xff]
    %v577 = vld [vmem:[%s4 + $0x8] sm:$0xff]
    %v578 = vld [vmem:[%s4 + $0x10] sm:$0xff]
    %v579 = vld [vmem:[%s4 + $0x18] sm:$0xff]
    %581 = vset.pattern.permute.xlu0 0
    %582 = vperm.xlu0 %581, %v576
    %v583 = vpop.permute.xlu0 %582
    %586 = vset.pattern.permute.xlu0 0
    %587 = vperm.xlu0 %586, %v577
    %v588 = vpop.permute.xlu0 %587
    %591 = vset.pattern.permute.xlu0 0
    %592 = vperm.xlu0 %591, %v578
    %v593 = vpop.permute.xlu0 %592
    %596 = vset.pattern.permute.xlu0 0
    %597 = vperm.xlu0 %596, %v579
    %v598 = vpop.permute.xlu0 %597
    %vm600 = vcmask 261120
    %v602 = vsel %vm600, %v572, 0
    %v605 = vsel %vm600, %v573, 0
    %v608 = vsel %vm600, %v574, 0
    %v611 = vsel %vm600, %v575, 0
    %613 = vmatprep.subr.mxu0 %v557
    %614 = vmatpush1.msra.mxu0 %v556
    %615 = vmatprep.subr.mxu0 %v561
    %616 = vmatpush1.msra.mxu0 %v560
    %617 = vmatprep.subr.mxu0 %v565
    %618 = vmatpush1.msra.mxu0 %v564
    %619 = vmatprep.subr.mxu0 %v569
    %620 = vmatpush1.msra.mxu0 %v568
    %621 = vmatprep.subr.mxu0 0.0
    %622 = vmatpush1.msra.mxu0 0.0
    %623 = vmatprep.subr.mxu0 0.0
    %624 = vmatpush1.msra.mxu0 0.0
    %625 = vmatprep.subr.mxu0 0.0
    %626 = vmatpush1.msra.mxu0 0.0
    %627 = vmatprep.subr.mxu0 0.0
    %628 = vmatpush1.msra.mxu0 0.0
    %629 = vmatprep.subr.mxu0 0.0
    %630 = vmatpush1.msra.mxu0 0.0
    %631 = vmatprep.subr.mxu0 0.0
    %632 = vmatpush1.msra.mxu0 0.0
    %633 = vmatprep.subr.mxu0 0.0
    %634 = vmatpush1.msra.mxu0 0.0
    %635 = vmatprep.subr.mxu0 0.0
    %636 = vmatpush1.msra.mxu0 0.0
    %637 = vmatprep.subr.mxu0 0.0
    %638 = vmatpush1.msra.mxu0 0.0
    %639 = vmatprep.subr.mxu0 0.0
    %640 = vmatpush1.msra.mxu0 0.0
    %641 = vmatprep.subr.mxu0 0.0
    %642 = vmatpush1.msra.mxu0 0.0
    %643 = vmatprep.subr.mxu0 0.0
    %644 = vmatpush1.msra.mxu0 0.0
    %645 = vmatprep.subr.mxu0 0.0
    %646 = vmatpush1.msra.mxu0 0.0
    %647 = vmatprep.subr.mxu0 0.0
    %648 = vmatpush1.msra.mxu0 0.0
    %649 = vmatprep.subr.mxu0 0.0
    %650 = vmatpush1.msra.mxu0 0.0
    %651 = vmatprep.subr.mxu0 0.0
    %652 = vmatpush1.msra.mxu0 0.0
    %653 = vmatprep.subr.mxu0 0.0
    %654 = vmatpush1.msra.mxu0 0.0
    %655 = vmatprep.subr.mxu0 0.0
    %656 = vmatpush1.msra.mxu0 0.0
    %657 = vmatprep.subr.mxu0 0.0
    %658 = vmatpush1.msra.mxu0 0.0
    %659 = vmatprep.subr.mxu0 0.0
    %660 = vmatpush1.msra.mxu0 0.0
    %661 = vmatprep.subr.mxu0 0.0
    %662 = vmatpush1.msra.mxu0 0.0
    %663 = vmatprep.subr.mxu0 0.0
    %664 = vmatpush1.msra.mxu0 0.0
    %665 = vmatprep.subr.mxu0 0.0
    %666 = vmatpush1.msra.mxu0 0.0
    %667 = vmatprep.subr.mxu0 0.0
    %668 = vmatpush1.msra.mxu0 0.0
    %669 = vmatprep.subr.mxu0 0.0
    %670 = vmatpush1.msra.mxu0 0.0
    %671 = vmatprep.subr.mxu0 0.0
    %672 = vmatpush1.msra.mxu0 0.0
    %673 = vmatprep.subr.mxu0 0.0
    %674 = vmatpush1.msra.mxu0 0.0
    %675 = vmatprep.subr.mxu0 0.0
    %676 = vmatpush1.msra.mxu0 0.0
    %677 = vmatprep.mubr.f32.mxu0 0.0
    %678 = vmatmul.mubr.f32.gmra.mrb[0].mxu0 %v602
    %v679 = vpop.f32.mrb[0].mxu0
    %v680 = vadd.f32 %v583, %v679
    %v681 = vpop.f32.mrb[0].mxu0
    %v682 = vadd.f32 %v583, %v681
    %683 = vmatprep.mubr.f32.mxu0 0.0
    %684 = vmatmul.mubr.f32.gmra.mrb[0].mxu0 %v605
    %v685 = vpop.f32.mrb[0].mxu0
    %v686 = vadd.f32 %v588, %v685
    %v687 = vpop.f32.mrb[0].mxu0
    %v688 = vadd.f32 %v588, %v687
    %689 = vmatprep.mubr.f32.mxu0 0.0
    %690 = vmatmul.mubr.f32.gmra.mrb[0].mxu0 %v608
    %v691 = vpop.f32.mrb[0].mxu0
    %v692 = vadd.f32 %v593, %v691
    %v693 = vpop.f32.mrb[0].mxu0
    %v694 = vadd.f32 %v593, %v693
    %695 = vmatprep.mubr.f32.mxu0 0.0
    %696 = vmatmul.mubr.f32.gmra.mrb[0].mxu0 %v611
    %v697 = vpop.f32.mrb[0].mxu0
    %v698 = vadd.f32 %v598, %v697
    %v699 = vpop.f32.mrb[0].mxu0
    %v700 = vadd.f32 %v598, %v699
    %701 = vdwg.mxu0
    %702 = vmatprep.subr.mxu0 %v559
    %703 = vmatpush1.msra.mxu0 %v558
    %704 = vmatprep.subr.mxu0 %v563
    %705 = vmatpush1.msra.mxu0 %v562
    %706 = vmatprep.subr.mxu0 %v567
    %707 = vmatpush1.msra.mxu0 %v566
    %708 = vmatprep.subr.mxu0 %v571
    %709 = vmatpush1.msra.mxu0 %v570
    %710 = vmatprep.subr.mxu0 0.0
    %711 = vmatpush1.msra.mxu0 0.0
    %712 = vmatprep.subr.mxu0 0.0
    %713 = vmatpush1.msra.mxu0 0.0
    %714 = vmatprep.subr.mxu0 0.0
    %715 = vmatpush1.msra.mxu0 0.0
    %716 = vmatprep.subr.mxu0 0.0
    %717 = vmatpush1.msra.mxu0 0.0
    %718 = vmatprep.subr.mxu0 0.0
    %719 = vmatpush1.msra.mxu0 0.0
    %720 = vmatprep.subr.mxu0 0.0
    %721 = vmatpush1.msra.mxu0 0.0
    %722 = vmatprep.subr.mxu0 0.0
    %723 = vmatpush1.msra.mxu0 0.0
    %724 = vmatprep.subr.mxu0 0.0
    %725 = vmatpush1.msra.mxu0 0.0
    %726 = vmatprep.subr.mxu0 0.0
    %727 = vmatpush1.msra.mxu0 0.0
    %728 = vmatprep.subr.mxu0 0.0
    %729 = vmatpush1.msra.mxu0 0.0
    %730 = vmatprep.subr.mxu0 0.0
    %731 = vmatpush1.msra.mxu0 0.0
    %732 = vmatprep.subr.mxu0 0.0
    %733 = vmatpush1.msra.mxu0 0.0
    %734 = vmatprep.subr.mxu0 0.0
    %735 = vmatpush1.msra.mxu0 0.0
    %736 = vmatprep.subr.mxu0 0.0
    %737 = vmatpush1.msra.mxu0 0.0
    %738 = vmatprep.subr.mxu0 0.0
    %739 = vmatpush1.msra.mxu0 0.0
    %740 = vmatprep.subr.mxu0 0.0
    %741 = vmatpush1.msra.mxu0 0.0
    %742 = vmatprep.subr.mxu0 0.0
    %743 = vmatpush1.msra.mxu0 0.0
    %744 = vmatprep.subr.mxu0 0.0
    %745 = vmatpush1.msra.mxu0 0.0
    %746 = vmatprep.subr.mxu0 0.0
    %747 = vmatpush1.msra.mxu0 0.0
    %748 = vmatprep.subr.mxu0 0.0
    %749 = vmatpush1.msra.mxu0 0.0
    %750 = vmatprep.subr.mxu0 0.0
    %751 = vmatpush1.msra.mxu0 0.0
    %752 = vmatprep.subr.mxu0 0.0
    %753 = vmatpush1.msra.mxu0 0.0
    %754 = vmatprep.subr.mxu0 0.0
    %755 = vmatpush1.msra.mxu0 0.0
    %756 = vmatprep.subr.mxu0 0.0
    %757 = vmatpush1.msra.mxu0 0.0
    %758 = vmatprep.subr.mxu0 0.0
    %759 = vmatpush1.msra.mxu0 0.0
    %760 = vmatprep.subr.mxu0 0.0
    %761 = vmatpush1.msra.mxu0 0.0
    %762 = vmatprep.subr.mxu0 0.0
    %763 = vmatpush1.msra.mxu0 0.0
    %764 = vmatprep.subr.mxu0 0.0
    %765 = vmatpush1.msra.mxu0 0.0
    %766 = vmatprep.mubr.f32.mxu0 0.0
    %767 = vmatmul.mubr.f32.gmra.mrb[0].mxu0 %v602
    %v768 = vpop.f32.mrb[0].mxu0
    %v769 = vadd.f32 %v583, %v768
    %v770 = vpop.f32.mrb[0].mxu0
    %v771 = vadd.f32 %v583, %v770
    %772 = vmatprep.mubr.f32.mxu0 0.0
    %773 = vmatmul.mubr.f32.gmra.mrb[0].mxu0 %v605
    %v774 = vpop.f32.mrb[0].mxu0
    %v775 = vadd.f32 %v588, %v774
    %v776 = vpop.f32.mrb[0].mxu0
    %v777 = vadd.f32 %v588, %v776
    %778 = vmatprep.mubr.f32.mxu0 0.0
    %779 = vmatmul.mubr.f32.gmra.mrb[0].mxu0 %v608
    %v780 = vpop.f32.mrb[0].mxu0
    %v781 = vadd.f32 %v593, %v780
    %v782 = vpop.f32.mrb[0].mxu0
    %v783 = vadd.f32 %v593, %v782
    %784 = vmatprep.mubr.f32.mxu0 0.0
    %785 = vmatmul.mubr.f32.gmra.mrb[0].mxu0 %v611
    %v786 = vpop.f32.mrb[0].mxu0
    %v787 = vadd.f32 %v598, %v786
    %v788 = vpop.f32.mrb[0].mxu0
    %v789 = vadd.f32 %v598, %v788
    %790 = vdwg.mxu0
    %v791 = vmul.f32 %v680, 0.5
    %v792 = vmul.f32 %v682, 0.5
    %v793 = vmul.f32 %v769, 0.5
    %v794 = vmul.f32 %v771, 0.5
    %v795 = vmul.f32 %v686, 0.5
    %v796 = vmul.f32 %v688, 0.5
    %v797 = vmul.f32 %v775, 0.5
    %v798 = vmul.f32 %v777, 0.5
    %v799 = vmul.f32 %v692, 0.5
    %v800 = vmul.f32 %v694, 0.5
    %v801 = vmul.f32 %v781, 0.5
    %v802 = vmul.f32 %v783, 0.5
    %v803 = vmul.f32 %v698, 0.5
    %v804 = vmul.f32 %v700, 0.5
    %v805 = vmul.f32 %v787, 0.5
    %v806 = vmul.f32 %v789, 0.5
    %v807 = vtanh.pop %v791
    %v808 = vtanh.pop %v792
    %v809 = vtanh.pop %v793
    %v810 = vtanh.pop %v794
    %v811 = vtanh.pop %v795
    %v812 = vtanh.pop %v796
    %v813 = vtanh.pop %v797
    %v814 = vtanh.pop %v798
    %v815 = vtanh.pop %v799
    %v816 = vtanh.pop %v800
    %v817 = vtanh.pop %v801
    %v818 = vtanh.pop %v802
    %v819 = vtanh.pop %v803
    %v820 = vtanh.pop %v804
    %v821 = vtanh.pop %v805
    %v822 = vtanh.pop %v806
    %v823 = vmul.f32 %v807, 0.5
    %v824 = vmul.f32 %v808, 0.5
    %v825 = vmul.f32 %v809, 0.5
    %v826 = vmul.f32 %v810, 0.5
    %v827 = vmul.f32 %v811, 0.5
    %v828 = vmul.f32 %v812, 0.5
    %v829 = vmul.f32 %v813, 0.5
    %v830 = vmul.f32 %v814, 0.5
    %v831 = vmul.f32 %v815, 0.5
    %v832 = vmul.f32 %v816, 0.5
    %v833 = vmul.f32 %v817, 0.5
    %v834 = vmul.f32 %v818, 0.5
    %v835 = vmul.f32 %v819, 0.5
    %v836 = vmul.f32 %v820, 0.5
    %v837 = vmul.f32 %v821, 0.5
    %v838 = vmul.f32 %v822, 0.5
    %v839 = vadd.f32 %v823, 0.5
    %v840 = vadd.f32 %v824, 0.5
    %v841 = vadd.f32 %v825, 0.5
    %v842 = vadd.f32 %v826, 0.5
    %v843 = vadd.f32 %v827, 0.5
    %v844 = vadd.f32 %v828, 0.5
    %v845 = vadd.f32 %v829, 0.5
    %v846 = vadd.f32 %v830, 0.5
    %v847 = vadd.f32 %v831, 0.5
    %v848 = vadd.f32 %v832, 0.5
    %v849 = vadd.f32 %v833, 0.5
    %v850 = vadd.f32 %v834, 0.5
    %v851 = vadd.f32 %v835, 0.5
    %v852 = vadd.f32 %v836, 0.5
    %v853 = vadd.f32 %v837, 0.5
    %v854 = vadd.f32 %v838, 0.5
    %v855 = vld [vmem:[%s5] sm:$0xff]
    %v856 = vld [vmem:[%s5 + $0x8] sm:$0xff]
    %v857 = vld [vmem:[%s5 + $0x10] sm:$0xff]
    %v858 = vld [vmem:[%s5 + $0x18] sm:$0xff]
    %v859 = vld [vmem:[%s6] sm:$0xff]
    %v860 = vld [vmem:[%s6 + $0x8] sm:$0xff]
    %v861 = vld [vmem:[%s6 + $0x10] sm:$0xff]
    %v862 = vld [vmem:[%s6 + $0x18] sm:$0xff]
    %864 = vset.pattern.permute.xlu0 0
    %865 = vperm.xlu0 %864, %v859
    %v866 = vpop.permute.xlu0 %865
    %869 = vset.pattern.permute.xlu0 0
    %870 = vperm.xlu0 %869, %v860
    %v871 = vpop.permute.xlu0 %870
    %874 = vset.pattern.permute.xlu0 0
    %875 = vperm.xlu0 %874, %v861
    %v876 = vpop.permute.xlu0 %875
    %879 = vset.pattern.permute.xlu0 0
    %880 = vperm.xlu0 %879, %v862
    %v881 = vpop.permute.xlu0 %880
    %v884 = vsel %vm600, %v855, 0
    %v887 = vsel %vm600, %v856, 0
    %v890 = vsel %vm600, %v857, 0
    %v893 = vsel %vm600, %v858, 0
    %895 = vmatprep.subr.mxu0 %v840
    %896 = vmatpush1.msra.mxu0 %v839
    %897 = vmatprep.subr.mxu0 %v844
    %898 = vmatpush1.msra.mxu0 %v843
    %899 = vmatprep.subr.mxu0 %v848
    %900 = vmatpush1.msra.mxu0 %v847
    %901 = vmatprep.subr.mxu0 %v852
    %902 = vmatpush1.msra.mxu0 %v851
    %903 = vmatprep.subr.mxu0 0.0
    %904 = vmatpush1.msra.mxu0 0.0
    %905 = vmatprep.subr.mxu0 0.0
    %906 = vmatpush1.msra.mxu0 0.0
    %907 = vmatprep.subr.mxu0 0.0
    %908 = vmatpush1.msra.mxu0 0.0
    %909 = vmatprep.subr.mxu0 0.0
    %910 = vmatpush1.msra.mxu0 0.0
    %911 = vmatprep.subr.mxu0 0.0
    %912 = vmatpush1.msra.mxu0 0.0
    %913 = vmatprep.subr.mxu0 0.0
    %914 = vmatpush1.msra.mxu0 0.0
    %915 = vmatprep.subr.mxu0 0.0
    %916 = vmatpush1.msra.mxu0 0.0
    %917 = vmatprep.subr.mxu0 0.0
    %918 = vmatpush1.msra.mxu0 0.0
    %919 = vmatprep.subr.mxu0 0.0
    %920 = vmatpush1.msra.mxu0 0.0
    %921 = vmatprep.subr.mxu0 0.0
    %922 = vmatpush1.msra.mxu0 0.0
    %923 = vmatprep.subr.mxu0 0.0
    %924 = vmatpush1.msra.mxu0 0.0
    %925 = vmatprep.subr.mxu0 0.0
    %926 = vmatpush1.msra.mxu0 0.0
    %927 = vmatprep.subr.mxu0 0.0
    %928 = vmatpush1.msra.mxu0 0.0
    %929 = vmatprep.subr.mxu0 0.0
    %930 = vmatpush1.msra.mxu0 0.0
    %931 = vmatprep.subr.mxu0 0.0
    %932 = vmatpush1.msra.mxu0 0.0
    %933 = vmatprep.subr.mxu0 0.0
    %934 = vmatpush1.msra.mxu0 0.0
    %935 = vmatprep.subr.mxu0 0.0
    %936 = vmatpush1.msra.mxu0 0.0
    %937 = vmatprep.subr.mxu0 0.0
    %938 = vmatpush1.msra.mxu0 0.0
    %939 = vmatprep.subr.mxu0 0.0
    %940 = vmatpush1.msra.mxu0 0.0
    %941 = vmatprep.subr.mxu0 0.0
    %942 = vmatpush1.msra.mxu0 0.0
    %943 = vmatprep.subr.mxu0 0.0
    %944 = vmatpush1.msra.mxu0 0.0
    %945 = vmatprep.subr.mxu0 0.0
    %946 = vmatpush1.msra.mxu0 0.0
    %947 = vmatprep.subr.mxu0 0.0
    %948 = vmatpush1.msra.mxu0 0.0
    %949 = vmatprep.subr.mxu0 0.0
    %950 = vmatpush1.msra.mxu0 0.0
    %951 = vmatprep.subr.mxu0 0.0
    %952 = vmatpush1.msra.mxu0 0.0
    %953 = vmatprep.subr.mxu0 0.0
    %954 = vmatpush1.msra.mxu0 0.0
    %955 = vmatprep.subr.mxu0 0.0
    %956 = vmatpush1.msra.mxu0 0.0
    %957 = vmatprep.subr.mxu0 0.0
    %958 = vmatpush1.msra.mxu0 0.0
    %959 = vmatprep.mubr.f32.mxu0 0.0
    %960 = vmatmul.mubr.f32.gmra.mrb[0].mxu0 %v884
    %v961 = vpop.f32.mrb[0].mxu0
    %v962 = vadd.f32 %v866, %v961
    %v963 = vpop.f32.mrb[0].mxu0
    %v964 = vadd.f32 %v866, %v963
    %965 = vmatprep.mubr.f32.mxu0 0.0
    %966 = vmatmul.mubr.f32.gmra.mrb[0].mxu0 %v887
    %v967 = vpop.f32.mrb[0].mxu0
    %v968 = vadd.f32 %v871, %v967
    %v969 = vpop.f32.mrb[0].mxu0
    %v970 = vadd.f32 %v871, %v969
    %971 = vmatprep.mubr.f32.mxu0 0.0
    %972 = vmatmul.mubr.f32.gmra.mrb[0].mxu0 %v890
    %v973 = vpop.f32.mrb[0].mxu0
    %v974 = vadd.f32 %v876, %v973
    %v975 = vpop.f32.mrb[0].mxu0
    %v976 = vadd.f32 %v876, %v975
    %977 = vmatprep.mubr.f32.mxu0 0.0
    %978 = vmatmul.mubr.f32.gmra.mrb[0].mxu0 %v893
    %v979 = vpop.f32.mrb[0].mxu0
    %v980 = vadd.f32 %v881, %v979
    %v981 = vpop.f32.mrb[0].mxu0
    %v982 = vadd.f32 %v881, %v981
    %983 = vdwg.mxu0
    %984 = vmatprep.subr.mxu0 %v842
    %985 = vmatpush1.msra.mxu0 %v841
    %986 = vmatprep.subr.mxu0 %v846
    %987 = vmatpush1.msra.mxu0 %v845
    %988 = vmatprep.subr.mxu0 %v850
    %989 = vmatpush1.msra.mxu0 %v849
    %990 = vmatprep.subr.mxu0 %v854
    %991 = vmatpush1.msra.mxu0 %v853
    %992 = vmatprep.subr.mxu0 0.0
    %993 = vmatpush1.msra.mxu0 0.0
    %994 = vmatprep.subr.mxu0 0.0
    %995 = vmatpush1.msra.mxu0 0.0
    %996 = vmatprep.subr.mxu0 0.0
    %997 = vmatpush1.msra.mxu0 0.0
    %998 = vmatprep.subr.mxu0 0.0
    %999 = vmatpush1.msra.mxu0 0.0
    %1000 = vmatprep.subr.mxu0 0.0
    %1001 = vmatpush1.msra.mxu0 0.0
    %1002 = vmatprep.subr.mxu0 0.0
    %1003 = vmatpush1.msra.mxu0 0.0
    %1004 = vmatprep.subr.mxu0 0.0
    %1005 = vmatpush1.msra.mxu0 0.0
    %1006 = vmatprep.subr.mxu0 0.0
    %1007 = vmatpush1.msra.mxu0 0.0
    %1008 = vmatprep.subr.mxu0 0.0
    %1009 = vmatpush1.msra.mxu0 0.0
    %1010 = vmatprep.subr.mxu0 0.0
    %1011 = vmatpush1.msra.mxu0 0.0
    %1012 = vmatprep.subr.mxu0 0.0
    %1013 = vmatpush1.msra.mxu0 0.0
    %1014 = vmatprep.subr.mxu0 0.0
    %1015 = vmatpush1.msra.mxu0 0.0
    %1016 = vmatprep.subr.mxu0 0.0
    %1017 = vmatpush1.msra.mxu0 0.0
    %1018 = vmatprep.subr.mxu0 0.0
    %1019 = vmatpush1.msra.mxu0 0.0
    %1020 = vmatprep.subr.mxu0 0.0
    %1021 = vmatpush1.msra.mxu0 0.0
    %1022 = vmatprep.subr.mxu0 0.0
    %1023 = vmatpush1.msra.mxu0 0.0
    %1024 = vmatprep.subr.mxu0 0.0
    %1025 = vmatpush1.msra.mxu0 0.0
    %1026 = vmatprep.subr.mxu0 0.0
    %1027 = vmatpush1.msra.mxu0 0.0
    %1028 = vmatprep.subr.mxu0 0.0
    %1029 = vmatpush1.msra.mxu0 0.0
    %1030 = vmatprep.subr.mxu0 0.0
    %1031 = vmatpush1.msra.mxu0 0.0
    %1032 = vmatprep.subr.mxu0 0.0
    %1033 = vmatpush1.msra.mxu0 0.0
    %1034 = vmatprep.subr.mxu0 0.0
    %1035 = vmatpush1.msra.mxu0 0.0
    %1036 = vmatprep.subr.mxu0 0.0
    %1037 = vmatpush1.msra.mxu0 0.0
    %1038 = vmatprep.subr.mxu0 0.0
    %1039 = vmatpush1.msra.mxu0 0.0
    %1040 = vmatprep.subr.mxu0 0.0
    %1041 = vmatpush1.msra.mxu0 0.0
    %1042 = vmatprep.subr.mxu0 0.0
    %1043 = vmatpush1.msra.mxu0 0.0
    %1044 = vmatprep.subr.mxu0 0.0
    %1045 = vmatpush1.msra.mxu0 0.0
    %1046 = vmatprep.subr.mxu0 0.0
    %1047 = vmatpush1.msra.mxu0 0.0
    %1048 = vmatprep.mubr.f32.mxu0 0.0
    %1049 = vmatmul.mubr.f32.gmra.mrb[0].mxu0 %v884
    %v1050 = vpop.f32.mrb[0].mxu0
    %v1051 = vadd.f32 %v866, %v1050
    %v1052 = vpop.f32.mrb[0].mxu0
    %v1053 = vadd.f32 %v866, %v1052
    %1054 = vmatprep.mubr.f32.mxu0 0.0
    %1055 = vmatmul.mubr.f32.gmra.mrb[0].mxu0 %v887
    %v1056 = vpop.f32.mrb[0].mxu0
    %v1057 = vadd.f32 %v871, %v1056
    %v1058 = vpop.f32.mrb[0].mxu0
    %v1059 = vadd.f32 %v871, %v1058
    %1060 = vmatprep.mubr.f32.mxu0 0.0
    %1061 = vmatmul.mubr.f32.gmra.mrb[0].mxu0 %v890
    %v1062 = vpop.f32.mrb[0].mxu0
    %v1063 = vadd.f32 %v876, %v1062
    %v1064 = vpop.f32.mrb[0].mxu0
    %v1065 = vadd.f32 %v876, %v1064
    %1066 = vmatprep.mubr.f32.mxu0 0.0
    %1067 = vmatmul.mubr.f32.gmra.mrb[0].mxu0 %v893
    %v1068 = vpop.f32.mrb[0].mxu0
    %v1069 = vadd.f32 %v881, %v1068
    %v1070 = vpop.f32.mrb[0].mxu0
    %v1071 = vadd.f32 %v881, %v1070
    %1072 = vdwg.mxu0
    %v1073 = vmul.f32 %v962, 0.5
    %v1074 = vmul.f32 %v964, 0.5
    %v1075 = vmul.f32 %v1051, 0.5
    %v1076 = vmul.f32 %v1053, 0.5
    %v1077 = vmul.f32 %v968, 0.5
    %v1078 = vmul.f32 %v970, 0.5
    %v1079 = vmul.f32 %v1057, 0.5
    %v1080 = vmul.f32 %v1059, 0.5
    %v1081 = vmul.f32 %v974, 0.5
    %v1082 = vmul.f32 %v976, 0.5
    %v1083 = vmul.f32 %v1063, 0.5
    %v1084 = vmul.f32 %v1065, 0.5
    %v1085 = vmul.f32 %v980, 0.5
    %v1086 = vmul.f32 %v982, 0.5
    %v1087 = vmul.f32 %v1069, 0.5
    %v1088 = vmul.f32 %v1071, 0.5
    %v1089 = vtanh.pop %v1073
    %v1090 = vtanh.pop %v1074
    %v1091 = vtanh.pop %v1075
    %v1092 = vtanh.pop %v1076
    %v1093 = vtanh.pop %v1077
    %v1094 = vtanh.pop %v1078
    %v1095 = vtanh.pop %v1079
    %v1096 = vtanh.pop %v1080
    %v1097 = vtanh.pop %v1081
    %v1098 = vtanh.pop %v1082
    %v1099 = vtanh.pop %v1083
    %v1100 = vtanh.pop %v1084
    %v1101 = vtanh.pop %v1085
    %v1102 = vtanh.pop %v1086
    %v1103 = vtanh.pop %v1087
    %v1104 = vtanh.pop %v1088
    %v1105 = vmul.f32 %v1089, 0.5
    %v1106 = vmul.f32 %v1090, 0.5
    %v1107 = vmul.f32 %v1091, 0.5
    %v1108 = vmul.f32 %v1092, 0.5
    %v1109 = vmul.f32 %v1093, 0.5
    %v1110 = vmul.f32 %v1094, 0.5
    %v1111 = vmul.f32 %v1095, 0.5
    %v1112 = vmul.f32 %v1096, 0.5
    %v1113 = vmul.f32 %v1097, 0.5
    %v1114 = vmul.f32 %v1098, 0.5
    %v1115 = vmul.f32 %v1099, 0.5
    %v1116 = vmul.f32 %v1100, 0.5
    %v1117 = vmul.f32 %v1101, 0.5
    %v1118 = vmul.f32 %v1102, 0.5
    %v1119 = vmul.f32 %v1103, 0.5
    %v1120 = vmul.f32 %v1104, 0.5
    %v1121 = vadd.f32 %v1105, 0.5
    %v1122 = vadd.f32 %v1106, 0.5
    %v1123 = vadd.f32 %v1107, 0.5
    %v1124 = vadd.f32 %v1108, 0.5
    %v1125 = vadd.f32 %v1109, 0.5
    %v1126 = vadd.f32 %v1110, 0.5
    %v1127 = vadd.f32 %v1111, 0.5
    %v1128 = vadd.f32 %v1112, 0.5
    %v1129 = vadd.f32 %v1113, 0.5
    %v1130 = vadd.f32 %v1114, 0.5
    %v1131 = vadd.f32 %v1115, 0.5
    %v1132 = vadd.f32 %v1116, 0.5
    %v1133 = vadd.f32 %v1117, 0.5
    %v1134 = vadd.f32 %v1118, 0.5
    %v1135 = vadd.f32 %v1119, 0.5
    %v1136 = vadd.f32 %v1120, 0.5
    %v1137 = vld [vmem:[%s7] sm:$0xff]
    %v1138 = vld [vmem:[%s8] sm:$0xff]
    %1140 = vset.pattern.permute.xlu0 0
    %1141 = vperm.xlu0 %1140, %v1138
    %v1142 = vpop.permute.xlu0 %1141
    %v1145 = vsel %vm600, %v1137, 0
    %1147 = vmatprep.subr.mxu0 %v1122
    %1148 = vmatpush1.msra.mxu0 %v1121
    %1149 = vmatprep.subr.mxu0 %v1126
    %1150 = vmatpush1.msra.mxu0 %v1125
    %1151 = vmatprep.subr.mxu0 %v1130
    %1152 = vmatpush1.msra.mxu0 %v1129
    %1153 = vmatprep.subr.mxu0 %v1134
    %1154 = vmatpush1.msra.mxu0 %v1133
    %1155 = vmatprep.subr.mxu0 0.0
    %1156 = vmatpush1.msra.mxu0 0.0
    %1157 = vmatprep.subr.mxu0 0.0
    %1158 = vmatpush1.msra.mxu0 0.0
    %1159 = vmatprep.subr.mxu0 0.0
    %1160 = vmatpush1.msra.mxu0 0.0
    %1161 = vmatprep.subr.mxu0 0.0
    %1162 = vmatpush1.msra.mxu0 0.0
    %1163 = vmatprep.subr.mxu0 0.0
    %1164 = vmatpush1.msra.mxu0 0.0
    %1165 = vmatprep.subr.mxu0 0.0
    %1166 = vmatpush1.msra.mxu0 0.0
    %1167 = vmatprep.subr.mxu0 0.0
    %1168 = vmatpush1.msra.mxu0 0.0
    %1169 = vmatprep.subr.mxu0 0.0
    %1170 = vmatpush1.msra.mxu0 0.0
    %1171 = vmatprep.subr.mxu0 0.0
    %1172 = vmatpush1.msra.mxu0 0.0
    %1173 = vmatprep.subr.mxu0 0.0
    %1174 = vmatpush1.msra.mxu0 0.0
    %1175 = vmatprep.subr.mxu0 0.0
    %1176 = vmatpush1.msra.mxu0 0.0
    %1177 = vmatprep.subr.mxu0 0.0
    %1178 = vmatpush1.msra.mxu0 0.0
    %1179 = vmatprep.subr.mxu0 0.0
    %1180 = vmatpush1.msra.mxu0 0.0
    %1181 = vmatprep.subr.mxu0 0.0
    %1182 = vmatpush1.msra.mxu0 0.0
    %1183 = vmatprep.subr.mxu0 0.0
    %1184 = vmatpush1.msra.mxu0 0.0
    %1185 = vmatprep.subr.mxu0 0.0
    %1186 = vmatpush1.msra.mxu0 0.0
    %1187 = vmatprep.subr.mxu0 0.0
    %1188 = vmatpush1.msra.mxu0 0.0
    %1189 = vmatprep.subr.mxu0 0.0
    %1190 = vmatpush1.msra.mxu0 0.0
    %1191 = vmatprep.subr.mxu0 0.0
    %1192 = vmatpush1.msra.mxu0 0.0
    %1193 = vmatprep.subr.mxu0 0.0
    %1194 = vmatpush1.msra.mxu0 0.0
    %1195 = vmatprep.subr.mxu0 0.0
    %1196 = vmatpush1.msra.mxu0 0.0
    %1197 = vmatprep.subr.mxu0 0.0
    %1198 = vmatpush1.msra.mxu0 0.0
    %1199 = vmatprep.subr.mxu0 0.0
    %1200 = vmatpush1.msra.mxu0 0.0
    %1201 = vmatprep.subr.mxu0 0.0
    %1202 = vmatpush1.msra.mxu0 0.0
    %1203 = vmatprep.subr.mxu0 0.0
    %1204 = vmatpush1.msra.mxu0 0.0
    %1205 = vmatprep.subr.mxu0 0.0
    %1206 = vmatpush1.msra.mxu0 0.0
    %1207 = vmatprep.subr.mxu0 0.0
    %1208 = vmatpush1.msra.mxu0 0.0
    %1209 = vmatprep.subr.mxu0 0.0
    %1210 = vmatpush1.msra.mxu0 0.0
    %1211 = vmatprep.mubr.f32.mxu0 0.0
    %1212 = vmatmul.mubr.f32.gmra.mrb[0].mxu0 %v1145
    %v1213 = vpop.f32.mrb[0].mxu0
    %v1214 = vadd.f32 %v1142, %v1213
    %v1215 = vpop.f32.mrb[0].mxu0
    %v1216 = vadd.f32 %v1142, %v1215
    %1217 = vdwg.mxu0
    %1218 = vmatprep.subr.mxu0 %v1124
    %1219 = vmatpush1.msra.mxu0 %v1123
    %1220 = vmatprep.subr.mxu0 %v1128
    %1221 = vmatpush1.msra.mxu0 %v1127
    %1222 = vmatprep.subr.mxu0 %v1132
    %1223 = vmatpush1.msra.mxu0 %v1131
    %1224 = vmatprep.subr.mxu0 %v1136
    %1225 = vmatpush1.msra.mxu0 %v1135
    %1226 = vmatprep.subr.mxu0 0.0
    %1227 = vmatpush1.msra.mxu0 0.0
    %1228 = vmatprep.subr.mxu0 0.0
    %1229 = vmatpush1.msra.mxu0 0.0
    %1230 = vmatprep.subr.mxu0 0.0
    %1231 = vmatpush1.msra.mxu0 0.0
    %1232 = vmatprep.subr.mxu0 0.0
    %1233 = vmatpush1.msra.mxu0 0.0
    %1234 = vmatprep.subr.mxu0 0.0
    %1235 = vmatpush1.msra.mxu0 0.0
    %1236 = vmatprep.subr.mxu0 0.0
    %1237 = vmatpush1.msra.mxu0 0.0
    %1238 = vmatprep.subr.mxu0 0.0
    %1239 = vmatpush1.msra.mxu0 0.0
    %1240 = vmatprep.subr.mxu0 0.0
    %1241 = vmatpush1.msra.mxu0 0.0
    %1242 = vmatprep.subr.mxu0 0.0
    %1243 = vmatpush1.msra.mxu0 0.0
    %1244 = vmatprep.subr.mxu0 0.0
    %1245 = vmatpush1.msra.mxu0 0.0
    %1246 = vmatprep.subr.mxu0 0.0
    %1247 = vmatpush1.msra.mxu0 0.0
    %1248 = vmatprep.subr.mxu0 0.0
    %1249 = vmatpush1.msra.mxu0 0.0
    %1250 = vmatprep.subr.mxu0 0.0
    %1251 = vmatpush1.msra.mxu0 0.0
    %1252 = vmatprep.subr.mxu0 0.0
    %1253 = vmatpush1.msra.mxu0 0.0
    %1254 = vmatprep.subr.mxu0 0.0
    %1255 = vmatpush1.msra.mxu0 0.0
    %1256 = vmatprep.subr.mxu0 0.0
    %1257 = vmatpush1.msra.mxu0 0.0
    %1258 = vmatprep.subr.mxu0 0.0
    %1259 = vmatpush1.msra.mxu0 0.0
    %1260 = vmatprep.subr.mxu0 0.0
    %1261 = vmatpush1.msra.mxu0 0.0
    %1262 = vmatprep.subr.mxu0 0.0
    %1263 = vmatpush1.msra.mxu0 0.0
    %1264 = vmatprep.subr.mxu0 0.0
    %1265 = vmatpush1.msra.mxu0 0.0
    %1266 = vmatprep.subr.mxu0 0.0
    %1267 = vmatpush1.msra.mxu0 0.0
    %1268 = vmatprep.subr.mxu0 0.0
    %1269 = vmatpush1.msra.mxu0 0.0
    %1270 = vmatprep.subr.mxu0 0.0
    %1271 = vmatpush1.msra.mxu0 0.0
    %1272 = vmatprep.subr.mxu0 0.0
    %1273 = vmatpush1.msra.mxu0 0.0
    %1274 = vmatprep.subr.mxu0 0.0
    %1275 = vmatpush1.msra.mxu0 0.0
    %1276 = vmatprep.subr.mxu0 0.0
    %1277 = vmatpush1.msra.mxu0 0.0
    %1278 = vmatprep.subr.mxu0 0.0
    %1279 = vmatpush1.msra.mxu0 0.0
    %1280 = vmatprep.subr.mxu0 0.0
    %1281 = vmatpush1.msra.mxu0 0.0
    %1282 = vmatprep.mubr.f32.mxu0 0.0
    %1283 = vmatmul.mubr.f32.gmra.mrb[0].mxu0 %v1145
    %v1284 = vpop.f32.mrb[0].mxu0
    %v1285 = vadd.f32 %v1142, %v1284
    %v1286 = vpop.f32.mrb[0].mxu0
    %v1287 = vadd.f32 %v1142, %v1286
    %1288 = vdwg.mxu0
    %1289 = vst [vmem:[#allocation2] sm:$0xff] %v1214
    %1290 = vst [vmem:[#allocation2 + $0x8] sm:$0xff] %v1216
    %1291 = vst [vmem:[#allocation2 + $0x10] sm:$0xff] %v1285
    %1292 = vst [vmem:[#allocation2 + $0x18] sm:$0xff] %v1287
    // Predicated region
    $region38: #{acoustic_model_v3_forward.1} parent=1 // pred_check
      _
    $region39: #{acoustic_model_v3_forward.1} parent=1 // pred_check_branch
      %1294 = sbr.rel (0) target = $region41
    $region40: #{acoustic_model_v3_forward.1} parent=1 // pred_region
      %s1296 = ssub.s32 512, 512
      %1297 = vsyncadd [#allocation3], %s1296
      %s1299 = sshll.u32 [#allocation2], 4
      %s1300 = int_to_ptr.vmem [resolvable:$true] %s1299
      %1302 = dma.vmem_to_hbm [thread:$0]  %s1300, 512, %s9, [#allocation3]
    $region41: #{acoustic_model_v3_forward.1} parent=1 // pred_fallthru
      _
    // Predicated region
    $region42: #{acoustic_model_v3_forward.1} parent=1 // pred_check
      _
    $region43: #{acoustic_model_v3_forward.1} parent=1 // pred_check_branch
      %1304 = sbr.rel (0) target = $region45
    $region44: #{acoustic_model_v3_forward.1} parent=1 // pred_region
      %1305 = dma.done [#allocation3], 512
    $region45: #{acoustic_model_v3_forward.1} parent=1 // pred_fallthru
      _
    %1306 = vsyncpa [#allocation3], 1

</llo_original>
